<compile_context>
chip_gen: v5e
topology: v5e:2x2
jax: 0.10.0
libtpu: 0.0.40
codegen_flags: <defaults>
</compile_context>

<pallas_src>
import math

import jax
import jax.numpy as jnp
from jax import lax
from jax.experimental import pallas as pl
from jax.experimental.pallas import tpu as pltpu


# ---------------------------------------------------------------------------
# Hardware-aware configuration helpers.
# ---------------------------------------------------------------------------

def _vmem_capacity_bytes():
    try:
        return int(pltpu.get_tpu_info().vmem_capacity_bytes)
    except Exception:
        return None


def _vmem_limit_bytes():
    cap = _vmem_capacity_bytes()
    if cap is None:
        return 64 * 1024 * 1024                       # conservative default
    # ~75% of physical VMEM: ~48 MiB on v7x (64 MiB/TC), ~96 MiB on v5e/v6e.
    return min(cap * 3 // 4, 100 * 1024 * 1024)


def _pick_tile(n, target, align=8):
    """Largest divisor of n that is <= target and a multiple of `align`;
    falls back to n itself (a full-extent block is always legal)."""
    if n <= target:
        return n
    t = (target // align) * align
    while t >= align:
        if n % t == 0:
            return t
        t -= align
    return n


def _const_spec(block_shape, index_map, single_buffer):
    """BlockSpec for operands whose index_map is constant (weights/biases)."""
    if single_buffer:
        return pl.BlockSpec(block_shape, index_map,
                            pipeline_mode=pl.Buffered(buffer_count=1))
    return pl.BlockSpec(block_shape, index_map)


# ---------------------------------------------------------------------------
# Stage 1: fused QKV projection kernel (runs once over all tokens).
# ---------------------------------------------------------------------------

def _qkv_proj_kernel(q_ref, k_ref, v_ref,
                     wq_ref, bq_ref, wk_ref, bk_ref, wv_ref, bv_ref,
                     qo_ref, ko_ref, vo_ref):
    qo_ref[...] = (jnp.dot(q_ref[...], wq_ref[...],
                           preferred_element_type=jnp.float32)
                   + bq_ref[...]).astype(qo_ref.dtype)
    ko_ref[...] = (jnp.dot(k_ref[...], wk_ref[...],
                           preferred_element_type=jnp.float32)
                   + bk_ref[...]).astype(ko_ref.dtype)
    vo_ref[...] = (jnp.dot(v_ref[...], wv_ref[...],
                           preferred_element_type=jnp.float32)
                   + bv_ref[...]).astype(vo_ref.dtype)


# ---------------------------------------------------------------------------
# Stage 2: flash attention + fused output projection.
# ---------------------------------------------------------------------------

def _make_flash_attn_kernel(num_head, head_dim, causal, tq, tk,
                            compute_dtype, approx_recip):
    nt_dims = (((1,), (1,)), ((), ()))   # Q @ K^T (contract last dim of both)
    nn_dims = (((1,), (0,)), ((), ()))   # plain matmul

    def kernel(q_ref, k_ref, v_ref, wo_ref, bo_ref, o_ref,
               m_scr, l_scr, acc_scr):
        qi = pl.program_id(1)
        ki = pl.program_id(2)
        nk = pl.num_programs(2)

        @pl.when(ki == 0)
        def _():
            m_scr[...] = jnp.full(m_scr.shape, -jnp.inf, jnp.float32)
            l_scr[...] = jnp.zeros(l_scr.shape, jnp.float32)
            acc_scr[...] = jnp.zeros(acc_scr.shape, jnp.float32)

        q = q_ref[0]    # (tq, E) compute_dtype — loaded once, no per-head cast
        k = k_ref[0]    # (tk, E)
        v = v_ref[0]    # (tk, E)

        if causal:
            row = qi * tq + lax.broadcasted_iota(jnp.int32, (tq, tk), 0)
            col = ki * tk + lax.broadcasted_iota(jnp.int32, (tq, tk), 1)
            causal_mask = col > row

        def process_kv_tile():
            # Static head loop; per-head state is flushed to VMEM scratch every
            # iteration, which bounds vreg live ranges.
            for h in range(num_head):
                sl = slice(h * head_dim, (h + 1) * head_dim)
                qh = q[:, sl]                               # (tq, D)
                kh = k[:, sl]                               # (tk, D)
                vh = v[:, sl]                               # (tk, D)
                s = lax.dot_general(qh, kh, nt_dims,
                                    preferred_element_type=jnp.float32)
                if causal:
                    s = jnp.where(causal_mask, jnp.float32(-1e9), s)
                # Online (flash) softmax update, kept in f32.
                m_prev = m_scr[h]                           # (tq, 1)
                m_new = jnp.maximum(m_prev,
                                    jnp.max(s, axis=-1, keepdims=True))
                alpha = jnp.exp(m_prev - m_new)
                p = jnp.exp(s - m_new)
                l_scr[h] = alpha * l_scr[h] + jnp.sum(p, axis=-1, keepdims=True)
                acc_scr[h] = alpha * acc_scr[h] + lax.dot_general(
                    p.astype(compute_dtype), vh, nn_dims,
                    preferred_element_type=jnp.float32)
                m_scr[h] = m_new

        if causal:
            # Skip KV tiles strictly above the diagonal (~2x attention FLOPs).
            pl.when(ki * tk <= qi * tq + (tq - 1))(process_kv_tile)
        else:
            process_kv_tile()

        @pl.when(ki == nk - 1)
        def _():
            # Fused output projection: per-head accumulation into a lane-dense
            # (tq, E) slab — the only HBM store is full-width.
            e = o_ref.shape[-1]
            out = jnp.zeros((tq, e), jnp.float32)
            for h in range(num_head):
                inv_l = pl.reciprocal(l_scr[h], approx=approx_recip)  # (tq, 1)
                ph = (acc_scr[h] * inv_l).astype(compute_dtype)       # (tq, D)
                wo_h = wo_ref[h * head_dim:(h + 1) * head_dim, :]     # (D, E)
                out = out + lax.dot_general(ph, wo_h, nn_dims,
                                            preferred_element_type=jnp.float32)
            o_ref[0] = (out + bo_ref[...]).astype(o_ref.dtype)

    return kernel


# ---------------------------------------------------------------------------
# Wrapper.
# ---------------------------------------------------------------------------

def _mha_impl(query, key, value, params, *, num_head, look_ahead_mask,
              compute_dtype, tq, tk, single_buffer_weights):
    B, S, E = query.shape
    D = E // num_head
    wq, bq, wk, bk, wv, bv, wo, bo = params

    # Host-side weight fusion: (H, E, D) -> (E, H*D) lane-stacked; scale folded.
    scale = 1.0 / math.sqrt(D)
    wq_full = (jnp.transpose(wq, (1, 0, 2)).reshape(E, E) * scale).astype(compute_dtype)
    bq_full = (bq.reshape(1, E) * scale).astype(jnp.float32)
    wk_full = jnp.transpose(wk, (1, 0, 2)).reshape(E, E).astype(compute_dtype)
    bk_full = bk.reshape(1, E).astype(jnp.float32)
    wv_full = jnp.transpose(wv, (1, 0, 2)).reshape(E, E).astype(compute_dtype)
    bv_full = bv.reshape(1, E).astype(jnp.float32)
    wo_full = wo.astype(compute_dtype)
    bo_full = bo.reshape(1, E).astype(jnp.float32)

    vmem_limit = _vmem_limit_bytes()

    # ---- Stage 1: QKV projection over flattened tokens (computed once). ----
    N = B * S
    tm = _pick_tile(N, 512)
    q2 = query.reshape(N, E).astype(compute_dtype)
    k2 = key.reshape(N, E).astype(compute_dtype)
    v2 = value.reshape(N, E).astype(compute_dtype)

    row_spec = pl.BlockSpec((tm, E), lambda i: (i, 0))
    w_spec = _const_spec((E, E), lambda i: (0, 0), single_buffer_weights)
    b_spec = _const_spec((1, E), lambda i: (0, 0), single_buffer_weights)
    proj_out = jax.ShapeDtypeStruct((N, E), compute_dtype)

    qp, kp, vp = pl.pallas_call(
        _qkv_proj_kernel,
        out_shape=(proj_out, proj_out, proj_out),
        grid_spec=pltpu.PrefetchScalarGridSpec(
            num_scalar_prefetch=0,
            grid=(N // tm,),
            in_specs=[row_spec, row_spec, row_spec,
                      w_spec, b_spec, w_spec, b_spec, w_spec, b_spec],
            out_specs=[row_spec, row_spec, row_spec]),
        compiler_params=pltpu.CompilerParams(
            dimension_semantics=("parallel",),
            vmem_limit_bytes=vmem_limit),
    )(q2, k2, v2, wq_full, bq_full, wk_full, bk_full, wv_full, bv_full)

    qp = qp.reshape(B, S, E)
    kp = kp.reshape(B, S, E)
    vp = vp.reshape(B, S, E)

    # ---- Stage 2: key-tiled flash attention + fused output projection. ----
    num_q = S // tq
    num_k = S // tk
    approx_recip = (compute_dtype != jnp.float32)
    kernel = _make_flash_attn_kernel(num_head, D, bool(look_ahead_mask),
                                     tq, tk, compute_dtype, approx_recip)

    q_spec = pl.BlockSpec((1, tq, E), lambda b, qi, ki: (b, qi, 0))
    kv_spec = pl.BlockSpec((1, tk, E), lambda b, qi, ki: (b, ki, 0))
    wo_spec = _const_spec((E, E), lambda b, qi, ki: (0, 0), single_buffer_weights)
    bo_spec = _const_spec((1, E), lambda b, qi, ki: (0, 0), single_buffer_weights)
    out_spec = pl.BlockSpec((1, tq, E), lambda b, qi, ki: (b, qi, 0))

    return pl.pallas_call(
        kernel,
        out_shape=jax.ShapeDtypeStruct((B, S, E), jnp.float32),
        grid_spec=pltpu.PrefetchScalarGridSpec(
            num_scalar_prefetch=0,
            grid=(B, num_q, num_k),
            in_specs=[q_spec, kv_spec, kv_spec, wo_spec, bo_spec],
            out_specs=out_spec,
            scratch_shapes=[pltpu.VMEM((num_head, tq, 1), jnp.float32),   # m
                            pltpu.VMEM((num_head, tq, 1), jnp.float32),   # l
                            pltpu.VMEM((num_head, tq, D), jnp.float32)]), # acc
        compiler_params=pltpu.CompilerParams(
            dimension_semantics=("parallel", "parallel", "arbitrary"),
            vmem_limit_bytes=vmem_limit),
    )(qp, kp, vp, wo_full, bo_full)


def multi_head_attention(query, key, value, params, *, num_head,
                         padding_mask=None, look_ahead_mask=False,
                         compute_dtype=jnp.bfloat16, tq=None, tk=None):
    """Pallas multi-head attention. query/key/value: (B, S, E) float32."""
    # TODO(synk): padding_mask is not implemented (the reference forward is
    # exercised with padding_mask=None here); fully-masked rows would need
    # explicit zeroing rather than a uniform softmax.
    assert padding_mask is None

    B, S, E = query.shape
    assert E % num_head == 0

    cap = _vmem_capacity_bytes()
    big_vmem = cap is not None and cap > 64 * 1024 * 1024
    if tq is None:
        tq = _pick_tile(S, 256 if big_vmem else 128)   # larger tiles on v5e/v6e
    if tk is None:
        tk = _pick_tile(S, 512)
    assert S % tq == 0 and S % tk == 0

    kwargs = dict(num_head=num_head, look_ahead_mask=look_ahead_mask,
                  compute_dtype=compute_dtype, tq=tq, tk=tk)
    try:
        # Single-buffer the constant-index weight/bias operands (halves their
        # VMEM footprint).  Fall back if this JAX build rejects pl.Buffered(1).
        return _mha_impl(query, key, value, params,
                         single_buffer_weights=True, **kwargs)
    except Exception:
        return _mha_impl(query, key, value, params,
                         single_buffer_weights=False, **kwargs)


# ---------------------------------------------------------------------------
# Parameter init + pure-JAX reference (mirrors the PyTorch module semantics).
# ---------------------------------------------------------------------------

def init_params(key, embedding_dim, num_head):
    D = embedding_dim // num_head
    ks = jax.random.split(key, 8)
    scale_h = 1.0 / math.sqrt(embedding_dim)
    wq = jax.random.normal(ks[0], (num_head, embedding_dim, D), jnp.float32) * scale_h
    bq = jax.random.normal(ks[1], (num_head, 1, D), jnp.float32) * 0.01
    wk = jax.random.normal(ks[2], (num_head, embedding_dim, D), jnp.float32) * scale_h
    bk = jax.random.normal(ks[3], (num_head, 1, D), jnp.float32) * 0.01
    wv = jax.random.normal(ks[4], (num_head, embedding_dim, D), jnp.float32) * scale_h
    bv = jax.random.normal(ks[5], (num_head, 1, D), jnp.float32) * 0.01
    wo = jax.random.normal(ks[6], (embedding_dim, embedding_dim), jnp.float32) * scale_h
    bo = jax.random.normal(ks[7], (1, embedding_dim), jnp.float32) * 0.01
    return (wq, bq, wk, bk, wv, bv, wo, bo)


def reference_mha(query, key, value, params, *, num_head, look_ahead_mask=False):
    wq, bq, wk, bk, wv, bv, wo, bo = params
    B, S, E = query.shape
    heads = []
    for h in range(num_head):
        qh = query @ wq[h] + bq[h]
        kh = key @ wk[h] + bk[h]
        vh = value @ wv[h] + bv[h]
        d = qh.shape[-1]
        scores = jnp.einsum("bqd,bkd->bqk", qh, kh) / math.sqrt(d)
        if look_ahead_mask:
            row = jnp.arange(S)[:, None]
            col = jnp.arange(S)[None, :]
            scores = jnp.where(col > row, -1e9, scores)
        p = jax.nn.softmax(scores, axis=-1)
        heads.append(jnp.einsum("bqk,bkd->bqd", p, vh))
    concat = jnp.concatenate(heads, axis=-1)
    return concat @ wo + bo


if __name__ == "__main__":
    B, S, E, H = 2, 8, 32, 4  # batch, seq, embedding_dim, num_head

    key = jax.random.PRNGKey(0)
    kq, kk, kv, kp = jax.random.split(key, 4)
    query = jax.random.normal(kq, (B, S, E), jnp.float32)
    key_in = jax.random.normal(kk, (B, S, E), jnp.float32)
    value = jax.random.normal(kv, (B, S, E), jnp.float32)
    params = init_params(kp, E, H)

    # --- f32 compute path: tight check (no mask, causal mask). ---
    out_f32 = multi_head_attention(query, key_in, value, params, num_head=H,
                                   look_ahead_mask=False,
                                   compute_dtype=jnp.float32)
    out_f32 = jax.block_until_ready(out_f32)
    ref = reference_mha(query, key_in, value, params,
                        num_head=H, look_ahead_mask=False)
    assert out_f32.shape == (B, S, E)
    assert jnp.allclose(out_f32, ref, atol=2e-4, rtol=2e-4)

    out_f32_c = multi_head_attention(query, key_in, value, params, num_head=H,
                                     look_ahead_mask=True,
                                     compute_dtype=jnp.float32)
    out_f32_c = jax.block_until_ready(out_f32_c)
    ref_c = reference_mha(query, key_in, value, params,
                          num_head=H, look_ahead_mask=True)
    assert jnp.allclose(out_f32_c, ref_c, atol=2e-4, rtol=2e-4)

    # --- bf16 MXU path (default): tightened tolerance per review. ---
    out_bf16 = multi_head_attention(query, key_in, value, params, num_head=H,
                                    look_ahead_mask=False)
    out_bf16 = jax.block_until_ready(out_bf16)
    assert jnp.allclose(out_bf16, ref, atol=1e-1, rtol=1e-1)

    print("KERNEL_OK")
</pallas_src>

<mosaic_0001>
module attributes {stable_mosaic.version = 11 : i64} {
  func.func @_qkv_proj_kernel(%arg0: i32, %arg1: memref<16x32xf32, #tpu.memory_space<vmem>>, %arg2: memref<16x32xf32, #tpu.memory_space<vmem>>, %arg3: memref<16x32xf32, #tpu.memory_space<vmem>>, %arg4: memref<32x32xf32, #tpu.memory_space<vmem>>, %arg5: memref<1x32xf32, #tpu.memory_space<vmem>>, %arg6: memref<32x32xf32, #tpu.memory_space<vmem>>, %arg7: memref<1x32xf32, #tpu.memory_space<vmem>>, %arg8: memref<32x32xf32, #tpu.memory_space<vmem>>, %arg9: memref<1x32xf32, #tpu.memory_space<vmem>>, %arg10: memref<16x32xf32, #tpu.memory_space<vmem>>, %arg11: memref<16x32xf32, #tpu.memory_space<vmem>>, %arg12: memref<16x32xf32, #tpu.memory_space<vmem>>) attributes {dimension_semantics = [#tpu.dimension_semantics<parallel>], iteration_bounds = array<i64: 1>, scalar_prefetch = 0 : i64, scratch_operands = 0 : i64, tpu.core_type = #tpu.core_type<tc>, window_params = [{transform_indices = @transform_0, window_bounds = array<i64: 16, 32>}, {transform_indices = @transform_1, window_bounds = array<i64: 16, 32>}, {transform_indices = @transform_2, window_bounds = array<i64: 16, 32>}, {pipeline_mode = #tpu.pipeline_mode<synchronous>, transform_indices = @transform_3, window_bounds = array<i64: 32, 32>}, {pipeline_mode = #tpu.pipeline_mode<synchronous>, transform_indices = @transform_4, window_bounds = array<i64: 1, 32>}, {pipeline_mode = #tpu.pipeline_mode<synchronous>, transform_indices = @transform_5, window_bounds = array<i64: 32, 32>}, {pipeline_mode = #tpu.pipeline_mode<synchronous>, transform_indices = @transform_6, window_bounds = array<i64: 1, 32>}, {pipeline_mode = #tpu.pipeline_mode<synchronous>, transform_indices = @transform_7, window_bounds = array<i64: 32, 32>}, {pipeline_mode = #tpu.pipeline_mode<synchronous>, transform_indices = @transform_8, window_bounds = array<i64: 1, 32>}, {transform_indices = @transform_9, window_bounds = array<i64: 16, 32>}, {transform_indices = @transform_10, window_bounds = array<i64: 16, 32>}, {transform_indices = @transform_11, window_bounds = array<i64: 16, 32>}]} {
    %c0 = arith.constant 0 : index
    %c0_0 = arith.constant 0 : index
    %0 = vector.load %arg1[%c0, %c0_0] : memref<16x32xf32, #tpu.memory_space<vmem>>, vector<16x32xf32>
    %c0_1 = arith.constant 0 : index
    %c0_2 = arith.constant 0 : index
    %1 = vector.load %arg4[%c0_1, %c0_2] : memref<32x32xf32, #tpu.memory_space<vmem>>, vector<32x32xf32>
    %cst = arith.constant dense<0.000000e+00> : vector<16x32xf32>
    %2 = tpu.matmul %0, %1, %cst {dimension_numbers = #tpu.dot_dimension_numbers<[1], [0], [0], [1], [0, 0, 1, 1], [], []>} : vector<16x32xf32>, vector<32x32xf32>, vector<16x32xf32> -> vector<16x32xf32>
    %c0_3 = arith.constant 0 : index
    %c0_4 = arith.constant 0 : index
    %3 = vector.load %arg5[%c0_3, %c0_4] : memref<1x32xf32, #tpu.memory_space<vmem>>, vector<1x32xf32>
    %4 = vector.broadcast %3 : vector<1x32xf32> to vector<16x32xf32>
    %5 = arith.addf %2, %4 : vector<16x32xf32>
    %c0_5 = arith.constant 0 : index
    %c0_6 = arith.constant 0 : index
    %6 = vector.load %arg10[%c0_5, %c0_6] : memref<16x32xf32, #tpu.memory_space<vmem>>, vector<16x32xf32>
    tpu.vector_store %arg10[%c0_5, %c0_6], %5 {strides = array<i32>} : memref<16x32xf32, #tpu.memory_space<vmem>>, vector<16x32xf32>,
    %c0_7 = arith.constant 0 : index
    %c0_8 = arith.constant 0 : index
    %7 = vector.load %arg2[%c0_7, %c0_8] : memref<16x32xf32, #tpu.memory_space<vmem>>, vector<16x32xf32>
    %c0_9 = arith.constant 0 : index
    %c0_10 = arith.constant 0 : index
    %8 = vector.load %arg6[%c0_9, %c0_10] : memref<32x32xf32, #tpu.memory_space<vmem>>, vector<32x32xf32>
    %cst_11 = arith.constant dense<0.000000e+00> : vector<16x32xf32>
    %9 = tpu.matmul %7, %8, %cst_11 {dimension_numbers = #tpu.dot_dimension_numbers<[1], [0], [0], [1], [0, 0, 1, 1], [], []>} : vector<16x32xf32>, vector<32x32xf32>, vector<16x32xf32> -> vector<16x32xf32>
    %c0_12 = arith.constant 0 : index
    %c0_13 = arith.constant 0 : index
    %10 = vector.load %arg7[%c0_12, %c0_13] : memref<1x32xf32, #tpu.memory_space<vmem>>, vector<1x32xf32>
    %11 = vector.broadcast %10 : vector<1x32xf32> to vector<16x32xf32>
    %12 = arith.addf %9, %11 : vector<16x32xf32>
    %c0_14 = arith.constant 0 : index
    %c0_15 = arith.constant 0 : index
    %13 = vector.load %arg11[%c0_14, %c0_15] : memref<16x32xf32, #tpu.memory_space<vmem>>, vector<16x32xf32>
    tpu.vector_store %arg11[%c0_14, %c0_15], %12 {strides = array<i32>} : memref<16x32xf32, #tpu.memory_space<vmem>>, vector<16x32xf32>,
    %c0_16 = arith.constant 0 : index
    %c0_17 = arith.constant 0 : index
    %14 = vector.load %arg3[%c0_16, %c0_17] : memref<16x32xf32, #tpu.memory_space<vmem>>, vector<16x32xf32>
    %c0_18 = arith.constant 0 : index
    %c0_19 = arith.constant 0 : index
    %15 = vector.load %arg8[%c0_18, %c0_19] : memref<32x32xf32, #tpu.memory_space<vmem>>, vector<32x32xf32>
    %cst_20 = arith.constant dense<0.000000e+00> : vector<16x32xf32>
    %16 = tpu.matmul %14, %15, %cst_20 {dimension_numbers = #tpu.dot_dimension_numbers<[1], [0], [0], [1], [0, 0, 1, 1], [], []>} : vector<16x32xf32>, vector<32x32xf32>, vector<16x32xf32> -> vector<16x32xf32>
    %c0_21 = arith.constant 0 : index
    %c0_22 = arith.constant 0 : index
    %17 = vector.load %arg9[%c0_21, %c0_22] : memref<1x32xf32, #tpu.memory_space<vmem>>, vector<1x32xf32>
    %18 = vector.broadcast %17 : vector<1x32xf32> to vector<16x32xf32>
    %19 = arith.addf %16, %18 : vector<16x32xf32>
    %c0_23 = arith.constant 0 : index
    %c0_24 = arith.constant 0 : index
    %20 = vector.load %arg12[%c0_23, %c0_24] : memref<16x32xf32, #tpu.memory_space<vmem>>, vector<16x32xf32>
    tpu.vector_store %arg12[%c0_23, %c0_24], %19 {strides = array<i32>} : memref<16x32xf32, #tpu.memory_space<vmem>>, vector<16x32xf32>,
    return
  }
  func.func @transform_0(%arg0: i32) -> (i32, i32) {
    %c0_i32 = arith.constant 0 : i32
    %c0_i32_0 = arith.constant 0 : i32
    return %arg0, %c0_i32 : i32, i32
  }
  func.func @transform_1(%arg0: i32) -> (i32, i32) {
    %c0_i32 = arith.constant 0 : i32
    %c0_i32_0 = arith.constant 0 : i32
    return %arg0, %c0_i32 : i32, i32
  }
  func.func @transform_2(%arg0: i32) -> (i32, i32) {
    %c0_i32 = arith.constant 0 : i32
    %c0_i32_0 = arith.constant 0 : i32
    return %arg0, %c0_i32 : i32, i32
  }
  func.func @transform_3(%arg0: i32) -> (i32, i32) {
    %c0_i32 = arith.constant 0 : i32
    %c0_i32_0 = arith.constant 0 : i32
    %c0_i32_1 = arith.constant 0 : i32
    return %c0_i32, %c0_i32_0 : i32, i32
  }
  func.func @transform_4(%arg0: i32) -> (i32, i32) {
    %c0_i32 = arith.constant 0 : i32
    %c0_i32_0 = arith.constant 0 : i32
    %c0_i32_1 = arith.constant 0 : i32
    return %c0_i32, %c0_i32_0 : i32, i32
  }
  func.func @transform_5(%arg0: i32) -> (i32, i32) {
    %c0_i32 = arith.constant 0 : i32
    %c0_i32_0 = arith.constant 0 : i32
    %c0_i32_1 = arith.constant 0 : i32
    return %c0_i32, %c0_i32_0 : i32, i32
  }
  func.func @transform_6(%arg0: i32) -> (i32, i32) {
    %c0_i32 = arith.constant 0 : i32
    %c0_i32_0 = arith.constant 0 : i32
    %c0_i32_1 = arith.constant 0 : i32
    return %c0_i32, %c0_i32_0 : i32, i32
  }
  func.func @transform_7(%arg0: i32) -> (i32, i32) {
    %c0_i32 = arith.constant 0 : i32
    %c0_i32_0 = arith.constant 0 : i32
    %c0_i32_1 = arith.constant 0 : i32
    return %c0_i32, %c0_i32_0 : i32, i32
  }
  func.func @transform_8(%arg0: i32) -> (i32, i32) {
    %c0_i32 = arith.constant 0 : i32
    %c0_i32_0 = arith.constant 0 : i32
    %c0_i32_1 = arith.constant 0 : i32
    return %c0_i32, %c0_i32_0 : i32, i32
  }
  func.func @transform_9(%arg0: i32) -> (i32, i32) {
    %c0_i32 = arith.constant 0 : i32
    %c0_i32_0 = arith.constant 0 : i32
    return %arg0, %c0_i32 : i32, i32
  }
  func.func @transform_10(%arg0: i32) -> (i32, i32) {
    %c0_i32 = arith.constant 0 : i32
    %c0_i32_0 = arith.constant 0 : i32
    return %arg0, %c0_i32 : i32, i32
  }
  func.func @transform_11(%arg0: i32) -> (i32, i32) {
    %c0_i32 = arith.constant 0 : i32
    %c0_i32_0 = arith.constant 0 : i32
    return %arg0, %c0_i32 : i32, i32
  }
}

module attributes {stable_mosaic.version = 11 : i64} {
  func.func @_qkv_proj_kernel(%arg0: i32, %arg1: memref<16x32xf32, #tpu.memory_space<vmem>>, %arg2: memref<16x32xf32, #tpu.memory_space<vmem>>, %arg3: memref<16x32xf32, #tpu.memory_space<vmem>>, %arg4: memref<32x32xf32, #tpu.memory_space<vmem>>, %arg5: memref<1x32xf32, #tpu.memory_space<vmem>>, %arg6: memref<32x32xf32, #tpu.memory_space<vmem>>, %arg7: memref<1x32xf32, #tpu.memory_space<vmem>>, %arg8: memref<32x32xf32, #tpu.memory_space<vmem>>, %arg9: memref<1x32xf32, #tpu.memory_space<vmem>>, %arg10: memref<16x32xf32, #tpu.memory_space<vmem>>, %arg11: memref<16x32xf32, #tpu.memory_space<vmem>>, %arg12: memref<16x32xf32, #tpu.memory_space<vmem>>) attributes {dimension_semantics = [#tpu.dimension_semantics<parallel>], iteration_bounds = array<i64: 1>, scalar_prefetch = 0 : i64, scratch_operands = 0 : i64, tpu.core_type = #tpu.core_type<tc>, window_params = [{transform_indices = @transform_0, window_bounds = array<i64: 16, 32>}, {transform_indices = @transform_1, window_bounds = array<i64: 16, 32>}, {transform_indices = @transform_2, window_bounds = array<i64: 16, 32>}, {pipeline_mode = #tpu.pipeline_mode<synchronous>, transform_indices = @transform_3, window_bounds = array<i64: 32, 32>}, {pipeline_mode = #tpu.pipeline_mode<synchronous>, transform_indices = @transform_4, window_bounds = array<i64: 1, 32>}, {pipeline_mode = #tpu.pipeline_mode<synchronous>, transform_indices = @transform_5, window_bounds = array<i64: 32, 32>}, {pipeline_mode = #tpu.pipeline_mode<synchronous>, transform_indices = @transform_6, window_bounds = array<i64: 1, 32>}, {pipeline_mode = #tpu.pipeline_mode<synchronous>, transform_indices = @transform_7, window_bounds = array<i64: 32, 32>}, {pipeline_mode = #tpu.pipeline_mode<synchronous>, transform_indices = @transform_8, window_bounds = array<i64: 1, 32>}, {transform_indices = @transform_9, window_bounds = array<i64: 16, 32>}, {transform_indices = @transform_10, window_bounds = array<i64: 16, 32>}, {transform_indices = @transform_11, window_bounds = array<i64: 16, 32>}]} {
    %c0 = arith.constant 0 : index
    %c0_0 = arith.constant 0 : index
    %0 = vector.load %arg1[%c0, %c0_0] : memref<16x32xf32, #tpu.memory_space<vmem>>, vector<16x32xf32>
    %c0_1 = arith.constant 0 : index
    %c0_2 = arith.constant 0 : index
    %1 = vector.load %arg4[%c0_1, %c0_2] : memref<32x32xf32, #tpu.memory_space<vmem>>, vector<32x32xf32>
    %cst = arith.constant dense<0.000000e+00> : vector<16x32xf32>
    %2 = tpu.matmul %0, %1, %cst {dimension_numbers = #tpu.dot_dimension_numbers<[1], [0], [0], [1], [0, 0, 1, 1], [], []>} : vector<16x32xf32>, vector<32x32xf32>, vector<16x32xf32> -> vector<16x32xf32>
    %c0_3 = arith.constant 0 : index
    %c0_4 = arith.constant 0 : index
    %3 = vector.load %arg5[%c0_3, %c0_4] : memref<1x32xf32, #tpu.memory_space<vmem>>, vector<1x32xf32>
    %4 = vector.broadcast %3 : vector<1x32xf32> to vector<16x32xf32>
    %5 = arith.addf %2, %4 : vector<16x32xf32>
    %c0_5 = arith.constant 0 : index
    %c0_6 = arith.constant 0 : index
    %6 = vector.load %arg10[%c0_5, %c0_6] : memref<16x32xf32, #tpu.memory_space<vmem>>, vector<16x32xf32>
    tpu.vector_store %arg10[%c0_5, %c0_6], %5 {strides = array<i32>} : memref<16x32xf32, #tpu.memory_space<vmem>>, vector<16x32xf32>,
    %c0_7 = arith.constant 0 : index
    %c0_8 = arith.constant 0 : index
    %7 = vector.load %arg2[%c0_7, %c0_8] : memref<16x32xf32, #tpu.memory_space<vmem>>, vector<16x32xf32>
    %c0_9 = arith.constant 0 : index
    %c0_10 = arith.constant 0 : index
    %8 = vector.load %arg6[%c0_9, %c0_10] : memref<32x32xf32, #tpu.memory_space<vmem>>, vector<32x32xf32>
    %cst_11 = arith.constant dense<0.000000e+00> : vector<16x32xf32>
    %9 = tpu.matmul %7, %8, %cst_11 {dimension_numbers = #tpu.dot_dimension_numbers<[1], [0], [0], [1], [0, 0, 1, 1], [], []>} : vector<16x32xf32>, vector<32x32xf32>, vector<16x32xf32> -> vector<16x32xf32>
    %c0_12 = arith.constant 0 : index
    %c0_13 = arith.constant 0 : index
    %10 = vector.load %arg7[%c0_12, %c0_13] : memref<1x32xf32, #tpu.memory_space<vmem>>, vector<1x32xf32>
    %11 = vector.broadcast %10 : vector<1x32xf32> to vector<16x32xf32>
    %12 = arith.addf %9, %11 : vector<16x32xf32>
    %c0_14 = arith.constant 0 : index
    %c0_15 = arith.constant 0 : index
    %13 = vector.load %arg11[%c0_14, %c0_15] : memref<16x32xf32, #tpu.memory_space<vmem>>, vector<16x32xf32>
    tpu.vector_store %arg11[%c0_14, %c0_15], %12 {strides = array<i32>} : memref<16x32xf32, #tpu.memory_space<vmem>>, vector<16x32xf32>,
    %c0_16 = arith.constant 0 : index
    %c0_17 = arith.constant 0 : index
    %14 = vector.load %arg3[%c0_16, %c0_17] : memref<16x32xf32, #tpu.memory_space<vmem>>, vector<16x32xf32>
    %c0_18 = arith.constant 0 : index
    %c0_19 = arith.constant 0 : index
    %15 = vector.load %arg8[%c0_18, %c0_19] : memref<32x32xf32, #tpu.memory_space<vmem>>, vector<32x32xf32>
    %cst_20 = arith.constant dense<0.000000e+00> : vector<16x32xf32>
    %16 = tpu.matmul %14, %15, %cst_20 {dimension_numbers = #tpu.dot_dimension_numbers<[1], [0], [0], [1], [0, 0, 1, 1], [], []>} : vector<16x32xf32>, vector<32x32xf32>, vector<16x32xf32> -> vector<16x32xf32>
    %c0_21 = arith.constant 0 : index
    %c0_22 = arith.constant 0 : index
    %17 = vector.load %arg9[%c0_21, %c0_22] : memref<1x32xf32, #tpu.memory_space<vmem>>, vector<1x32xf32>
    %18 = vector.broadcast %17 : vector<1x32xf32> to vector<16x32xf32>
    %19 = arith.addf %16, %18 : vector<16x32xf32>
    %c0_23 = arith.constant 0 : index
    %c0_24 = arith.constant 0 : index
    %20 = vector.load %arg12[%c0_23, %c0_24] : memref<16x32xf32, #tpu.memory_space<vmem>>, vector<16x32xf32>
    tpu.vector_store %arg12[%c0_23, %c0_24], %19 {strides = array<i32>} : memref<16x32xf32, #tpu.memory_space<vmem>>, vector<16x32xf32>,
    return
  }
  func.func @transform_0(%arg0: i32) -> (i32, i32) {
    %c0_i32 = arith.constant 0 : i32
    %c0_i32_0 = arith.constant 0 : i32
    return %arg0, %c0_i32 : i32, i32
  }
  func.func @transform_1(%arg0: i32) -> (i32, i32) {
    %c0_i32 = arith.constant 0 : i32
    %c0_i32_0 = arith.constant 0 : i32
    return %arg0, %c0_i32 : i32, i32
  }
  func.func @transform_2(%arg0: i32) -> (i32, i32) {
    %c0_i32 = arith.constant 0 : i32
    %c0_i32_0 = arith.constant 0 : i32
    return %arg0, %c0_i32 : i32, i32
  }
  func.func @transform_3(%arg0: i32) -> (i32, i32) {
    %c0_i32 = arith.constant 0 : i32
    %c0_i32_0 = arith.constant 0 : i32
    %c0_i32_1 = arith.constant 0 : i32
    return %c0_i32, %c0_i32_0 : i32, i32
  }
  func.func @transform_4(%arg0: i32) -> (i32, i32) {
    %c0_i32 = arith.constant 0 : i32
    %c0_i32_0 = arith.constant 0 : i32
    %c0_i32_1 = arith.constant 0 : i32
    return %c0_i32, %c0_i32_0 : i32, i32
  }
  func.func @transform_5(%arg0: i32) -> (i32, i32) {
    %c0_i32 = arith.constant 0 : i32
    %c0_i32_0 = arith.constant 0 : i32
    %c0_i32_1 = arith.constant 0 : i32
    return %c0_i32, %c0_i32_0 : i32, i32
  }
  func.func @transform_6(%arg0: i32) -> (i32, i32) {
    %c0_i32 = arith.constant 0 : i32
    %c0_i32_0 = arith.constant 0 : i32
    %c0_i32_1 = arith.constant 0 : i32
    return %c0_i32, %c0_i32_0 : i32, i32
  }
  func.func @transform_7(%arg0: i32) -> (i32, i32) {
    %c0_i32 = arith.constant 0 : i32
    %c0_i32_0 = arith.constant 0 : i32
    %c0_i32_1 = arith.constant 0 : i32
    return %c0_i32, %c0_i32_0 : i32, i32
  }
  func.func @transform_8(%arg0: i32) -> (i32, i32) {
    %c0_i32 = arith.constant 0 : i32
    %c0_i32_0 = arith.constant 0 : i32
    %c0_i32_1 = arith.constant 0 : i32
    return %c0_i32, %c0_i32_0 : i32, i32
  }
  func.func @transform_9(%arg0: i32) -> (i32, i32) {
    %c0_i32 = arith.constant 0 : i32
    %c0_i32_0 = arith.constant 0 : i32
    return %arg0, %c0_i32 : i32, i32
  }
  func.func @transform_10(%arg0: i32) -> (i32, i32) {
    %c0_i32 = arith.constant 0 : i32
    %c0_i32_0 = arith.constant 0 : i32
    return %arg0, %c0_i32 : i32, i32
  }
  func.func @transform_11(%arg0: i32) -> (i32, i32) {
    %c0_i32 = arith.constant 0 : i32
    %c0_i32_0 = arith.constant 0 : i32
    return %arg0, %c0_i32 : i32, i32
  }
}

</mosaic_0001>

<llo_original>
// kernel: tpu_custom_call.1
$region0: #{tpu_custom_call.1}
  #allocation0 [shape = 'u32[]', space=smem, size = 0x4, offset = 0x4, fixed_abs, tag = 'smem constant byte address 0x4 - core index']
  #allocation1 [shape = 'u32[72,128]{1,0:T(1,128)}', space=vmem, size = 0x9000, scoped, tag = 'internal scratch']
  %s0 = inlined_call_operand.hbm [shape: f32[16,32], index: 0, kind: input, shape index: {}]
  %s1 = inlined_call_operand.hbm [shape: f32[16,32], index: 1, kind: input, shape index: {}]
  %s2 = inlined_call_operand.hbm [shape: f32[16,32], index: 2, kind: input, shape index: {}]
  %s3 = inlined_call_operand.hbm [shape: f32[32,32], index: 3, kind: input, shape index: {}]
  %s4 = inlined_call_operand.vmem [shape: f32[1,32], index: 4, kind: input, shape index: {}]
  %s5 = inlined_call_operand.hbm [shape: f32[32,32], index: 5, kind: input, shape index: {}]
  %s6 = inlined_call_operand.vmem [shape: f32[1,32], index: 6, kind: input, shape index: {}]
  %s7 = inlined_call_operand.hbm [shape: f32[32,32], index: 7, kind: input, shape index: {}]
  %s8 = inlined_call_operand.vmem [shape: f32[1,32], index: 8, kind: input, shape index: {}]
  %s9 = inlined_call_operand.hbm [shape: f32[16,32], index: 9, kind: output, shape index: {0}]
  %s10 = inlined_call_operand.hbm [shape: f32[16,32], index: 10, kind: output, shape index: {1}]
  %s11 = inlined_call_operand.hbm [shape: f32[16,32], index: 11, kind: output, shape index: {2}]
  %12 = xla_tuple %s9, %s10, %s11
  %s13 = sld [smem:[#allocation0]]
  $region86: #{tpu_custom_call.1} parent=0
    _
  %s15 = ssub.s32 1, %s13
  %s16 = scalar_select 0, %s15, %s13
  $region1: #{tpu_custom_call.1} parent=0
    #allocation2 [shape = 'u8[8192]{0}', space=vmem, size = 0x2000, scoped, tag = 'input window, operand 0, single buffered']
    #allocation3 [shape = 's32[1]{0}', space=sflag, size = 0x4, scoped, tag = 'scoped memory for tpu_custom_call.1']
    #allocation4 [shape = 's32[1]{0}', space=sflag, size = 0x4, scoped, tag = 'scoped memory for tpu_custom_call.1']
    #allocation5 [shape = 'u8[8192]{0}', space=vmem, size = 0x2000, scoped, tag = 'input window, operand 1, single buffered']
    #allocation6 [shape = 's32[1]{0}', space=sflag, size = 0x4, scoped, tag = 'scoped memory for tpu_custom_call.1']
    #allocation7 [shape = 'u8[8192]{0}', space=vmem, size = 0x2000, scoped, tag = 'input window, operand 2, single buffered']
    #allocation8 [shape = 'u8[16384]{0}', space=vmem, size = 0x4000, scoped, tag = 'input window, operand 3, single buffered']
    #allocation9 [shape = 's32[1]{0}', space=sflag, size = 0x4, scoped, tag = 'scoped memory for tpu_custom_call.1']
    #allocation10 [shape = 'u8[16384]{0}', space=vmem, size = 0x4000, scoped, tag = 'input window, operand 5, single buffered']
    #allocation11 [shape = 'u8[16384]{0}', space=vmem, size = 0x4000, scoped, tag = 'input window, operand 7, single buffered']
    #allocation12 [shape = 's32[1]{0}', space=sflag, size = 0x4, scoped, tag = 'scoped memory for tpu_custom_call.1']
    #allocation13 [shape = 'u8[8192]{0}', space=vmem, size = 0x2000, scoped, tag = 'output window, operand 0, single buffered']
    #allocation14 [shape = 'u8[8192]{0}', space=vmem, size = 0x2000, scoped, tag = 'output window, operand 1, single buffered']
    #allocation15 [shape = 's32[1]{0}', space=sflag, size = 0x4, scoped, tag = 'scoped memory for tpu_custom_call.1']
    #allocation16 [shape = 'u8[8192]{0}', space=vmem, size = 0x2000, scoped, tag = 'output window, operand 2, single buffered']
    %17 = vsyncpa [#allocation3], 0
    %18 = vsyncpa [#allocation6], 0
    %19 = vsyncpa [#allocation9], 0
    %20 = vsyncpa [#allocation12], 0
    %21 = vsyncpa [#allocation4], 0
    %22 = vsyncpa [#allocation15], 0
    // Predicated region
    $region2: #{tpu_custom_call.1} parent=1 // pred_check
      _
    $region3: #{tpu_custom_call.1} parent=1 // pred_check_branch
      %24 = sbr.rel (0) target = $region5
    $region4: #{tpu_custom_call.1} parent=1 // pred_region
      %26 = vsyncadd [#allocation3], 0
      %s27 = sshll.u32 %s0, 4
      %s28 = int_to_ptr.hbm [resolvable:$true] %s27
      %s29 = sshll.u32 [#allocation2], 4
      %s30 = int_to_ptr.vmem [resolvable:$true] %s29
      %35 = dma.hbm_to_vmem [thread:$0]  %s28, 256, %s30, [#allocation3], 128, 128, 8
    $region5: #{tpu_custom_call.1} parent=1 // pred_fallthru
      _
    // Predicated region
    $region6: #{tpu_custom_call.1} parent=1 // pred_check
      _
    $region7: #{tpu_custom_call.1} parent=1 // pred_check_branch
      %37 = sbr.rel (0) target = $region9
    $region8: #{tpu_custom_call.1} parent=1 // pred_region
      %39 = vsyncadd [#allocation6], 0
      %s40 = sshll.u32 %s1, 4
      %s41 = int_to_ptr.hbm [resolvable:$true] %s40
      %s42 = sshll.u32 [#allocation5], 4
      %s43 = int_to_ptr.vmem [resolvable:$true] %s42
      %48 = dma.hbm_to_vmem [thread:$0]  %s41, 256, %s43, [#allocation6], 128, 128, 8
    $region9: #{tpu_custom_call.1} parent=1 // pred_fallthru
      _
    // Predicated region
    $region10: #{tpu_custom_call.1} parent=1 // pred_check
      _
    $region11: #{tpu_custom_call.1} parent=1 // pred_check_branch
      %50 = sbr.rel (0) target = $region13
    $region12: #{tpu_custom_call.1} parent=1 // pred_region
      %52 = vsyncadd [#allocation6], 0
      %s53 = sshll.u32 %s2, 4
      %s54 = int_to_ptr.hbm [resolvable:$true] %s53
      %s55 = sshll.u32 [#allocation7], 4
      %s56 = int_to_ptr.vmem [resolvable:$true] %s55
      %61 = dma.hbm_to_vmem [thread:$0]  %s54, 256, %s56, [#allocation6], 128, 128, 8
    $region13: #{tpu_custom_call.1} parent=1 // pred_fallthru
      _
    // Predicated region
    $region14: #{tpu_custom_call.1} parent=1 // pred_check
      _
    $region15: #{tpu_custom_call.1} parent=1 // pred_check_branch
      %63 = sbr.rel (0) target = $region17
    $region16: #{tpu_custom_call.1} parent=1 // pred_region
      %65 = vsyncadd [#allocation9], 0
      %s66 = sshll.u32 %s3, 4
      %s67 = int_to_ptr.hbm [resolvable:$true] %s66
      %s68 = sshll.u32 [#allocation8], 4
      %s69 = int_to_ptr.vmem [resolvable:$true] %s68
      %74 = dma.hbm_to_vmem [thread:$0]  %s67, 512, %s69, [#allocation9], 128, 128, 8
    $region17: #{tpu_custom_call.1} parent=1 // pred_fallthru
      _
    // Predicated region
    $region18: #{tpu_custom_call.1} parent=1 // pred_check
      _
    $region19: #{tpu_custom_call.1} parent=1 // pred_check_branch
      %76 = sbr.rel (0) target = $region21
    $region20: #{tpu_custom_call.1} parent=1 // pred_region
      _
    $region21: #{tpu_custom_call.1} parent=1 // pred_fallthru
      _
    // Predicated region
    $region22: #{tpu_custom_call.1} parent=1 // pred_check
      _
    $region23: #{tpu_custom_call.1} parent=1 // pred_check_branch
      %78 = sbr.rel (0) target = $region25
    $region24: #{tpu_custom_call.1} parent=1 // pred_region
      %80 = vsyncadd [#allocation9], 0
      %s81 = sshll.u32 %s5, 4
      %s82 = int_to_ptr.hbm [resolvable:$true] %s81
      %s83 = sshll.u32 [#allocation10], 4
      %s84 = int_to_ptr.vmem [resolvable:$true] %s83
      %89 = dma.hbm_to_vmem [thread:$0]  %s82, 512, %s84, [#allocation9], 128, 128, 8
    $region25: #{tpu_custom_call.1} parent=1 // pred_fallthru
      _
    // Predicated region
    $region26: #{tpu_custom_call.1} parent=1 // pred_check
      _
    $region27: #{tpu_custom_call.1} parent=1 // pred_check_branch
      %91 = sbr.rel (0) target = $region29
    $region28: #{tpu_custom_call.1} parent=1 // pred_region
      _
    $region29: #{tpu_custom_call.1} parent=1 // pred_fallthru
      _
    // Predicated region
    $region30: #{tpu_custom_call.1} parent=1 // pred_check
      _
    $region31: #{tpu_custom_call.1} parent=1 // pred_check_branch
      %93 = sbr.rel (0) target = $region33
    $region32: #{tpu_custom_call.1} parent=1 // pred_region
      %95 = vsyncadd [#allocation12], 0
      %s96 = sshll.u32 %s7, 4
      %s97 = int_to_ptr.hbm [resolvable:$true] %s96
      %s98 = sshll.u32 [#allocation11], 4
      %s99 = int_to_ptr.vmem [resolvable:$true] %s98
      %104 = dma.hbm_to_vmem [thread:$0]  %s97, 512, %s99, [#allocation12], 128, 128, 8
    $region33: #{tpu_custom_call.1} parent=1 // pred_fallthru
      _
    // Predicated region
    $region34: #{tpu_custom_call.1} parent=1 // pred_check
      _
    $region35: #{tpu_custom_call.1} parent=1 // pred_check_branch
      %106 = sbr.rel (0) target = $region37
    $region36: #{tpu_custom_call.1} parent=1 // pred_region
      _
    $region37: #{tpu_custom_call.1} parent=1 // pred_fallthru
      _
    // Predicated region
    $region38: #{tpu_custom_call.1} parent=1 // pred_check
      _
    $region39: #{tpu_custom_call.1} parent=1 // pred_check_branch
      %108 = sbr.rel (0) target = $region41
    $region40: #{tpu_custom_call.1} parent=1 // pred_region
      %110 = dma.done [#allocation3], 256
    $region41: #{tpu_custom_call.1} parent=1 // pred_fallthru
      _
    // Predicated region
    $region42: #{tpu_custom_call.1} parent=1 // pred_check
      _
    $region43: #{tpu_custom_call.1} parent=1 // pred_check_branch
      %112 = sbr.rel (0) target = $region45
    $region44: #{tpu_custom_call.1} parent=1 // pred_region
      %114 = dma.done [#allocation6], 256
    $region45: #{tpu_custom_call.1} parent=1 // pred_fallthru
      _
    // Predicated region
    $region46: #{tpu_custom_call.1} parent=1 // pred_check
      _
    $region47: #{tpu_custom_call.1} parent=1 // pred_check_branch
      %116 = sbr.rel (0) target = $region49
    $region48: #{tpu_custom_call.1} parent=1 // pred_region
      %118 = dma.done [#allocation6], 256
    $region49: #{tpu_custom_call.1} parent=1 // pred_fallthru
      _
    // Predicated region
    $region50: #{tpu_custom_call.1} parent=1 // pred_check
      _
    $region51: #{tpu_custom_call.1} parent=1 // pred_check_branch
      %120 = sbr.rel (0) target = $region53
    $region52: #{tpu_custom_call.1} parent=1 // pred_region
      %122 = dma.done [#allocation9], 512
    $region53: #{tpu_custom_call.1} parent=1 // pred_fallthru
      _
    // Predicated region
    $region54: #{tpu_custom_call.1} parent=1 // pred_check
      _
    $region55: #{tpu_custom_call.1} parent=1 // pred_check_branch
      %124 = sbr.rel (0) target = $region57
    $region56: #{tpu_custom_call.1} parent=1 // pred_region
      %126 = dma.done [#allocation9], 512
    $region57: #{tpu_custom_call.1} parent=1 // pred_fallthru
      _
    // Predicated region
    $region58: #{tpu_custom_call.1} parent=1 // pred_check
      _
    $region59: #{tpu_custom_call.1} parent=1 // pred_check_branch
      %128 = sbr.rel (0) target = $region61
    $region60: #{tpu_custom_call.1} parent=1 // pred_region
      %130 = dma.done [#allocation12], 512
    $region61: #{tpu_custom_call.1} parent=1 // pred_fallthru
      _
    %v131 = vld [vmem:[#allocation2] sm:$0xff]
    %v132 = vld [vmem:[#allocation2 + $0x8] sm:$0xff]
    %v133 = vld [vmem:[#allocation8] sm:$0xff]
    %v134 = vld [vmem:[#allocation8 + $0x8] sm:$0xff]
    %v135 = vld [vmem:[#allocation8 + $0x10] sm:$0xff]
    %v136 = vld [vmem:[#allocation8 + $0x18] sm:$0xff]
    %v137 = vld [vmem:[%s4] sm:$0x1]
    %v139 = vperm.slane %v137, 0
    %vm141 = vcmask 261120
    %v143 = vsel %vm141, %v131, 0
    %v146 = vsel %vm141, %v132, 0
    %148 = vmatpush.msra.mxu0 0.0
    %149 = vmatpush.msra.mxu0 0.0
    %150 = vmatpush.msra.mxu0 0.0
    %151 = vmatpush.msra.mxu0 0.0
    %152 = vmatpush.msra.mxu0 0.0
    %153 = vmatpush.msra.mxu0 0.0
    %154 = vmatpush.msra.mxu0 0.0
    %155 = vmatpush.msra.mxu0 0.0
    %156 = vmatpush.msra.mxu0 0.0
    %157 = vmatpush.msra.mxu0 0.0
    %158 = vmatpush.msra.mxu0 0.0
    %159 = vmatpush.msra.mxu0 0.0
    %160 = vmatpush.msra.mxu0 %v136
    %161 = vmatpush.msra.mxu0 %v135
    %162 = vmatpush.msra.mxu0 %v134
    %163 = vmatpush.msra.mxu0 %v133
    %164 = vmatmul.f32.gmra.mxu0 %v143
    %v165 = vpop.f32.mrf.mxu0
    %v166 = vadd.f32 %v139, %v165
    %167 = vmatmul.f32.gmra.mxu0 %v146
    %v168 = vpop.f32.mrf.mxu0
    %v169 = vadd.f32 %v139, %v168
    %170 = vdwg.mxu0
    %171 = vst.msk [vmem:[#allocation13] sm:$0xff] %vm141, %v166
    %172 = vst.msk [vmem:[#allocation13 + $0x8] sm:$0xff] %vm141, %v169
    %v173 = vld [vmem:[#allocation5] sm:$0xff]
    %v174 = vld [vmem:[#allocation5 + $0x8] sm:$0xff]
    %v175 = vld [vmem:[#allocation10] sm:$0xff]
    %v176 = vld [vmem:[#allocation10 + $0x8] sm:$0xff]
    %v177 = vld [vmem:[#allocation10 + $0x10] sm:$0xff]
    %v178 = vld [vmem:[#allocation10 + $0x18] sm:$0xff]
    %v179 = vld [vmem:[%s6] sm:$0x1]
    %v181 = vperm.slane %v179, 0
    %v184 = vsel %vm141, %v173, 0
    %v187 = vsel %vm141, %v174, 0
    %189 = vmatpush.msra.mxu0 0.0
    %190 = vmatpush.msra.mxu0 0.0
    %191 = vmatpush.msra.mxu0 0.0
    %192 = vmatpush.msra.mxu0 0.0
    %193 = vmatpush.msra.mxu0 0.0
    %194 = vmatpush.msra.mxu0 0.0
    %195 = vmatpush.msra.mxu0 0.0
    %196 = vmatpush.msra.mxu0 0.0
    %197 = vmatpush.msra.mxu0 0.0
    %198 = vmatpush.msra.mxu0 0.0
    %199 = vmatpush.msra.mxu0 0.0
    %200 = vmatpush.msra.mxu0 0.0
    %201 = vmatpush.msra.mxu0 %v178
    %202 = vmatpush.msra.mxu0 %v177
    %203 = vmatpush.msra.mxu0 %v176
    %204 = vmatpush.msra.mxu0 %v175
    %205 = vmatmul.f32.gmra.mxu0 %v184
    %v206 = vpop.f32.mrf.mxu0
    %v207 = vadd.f32 %v181, %v206
    %208 = vmatmul.f32.gmra.mxu0 %v187
    %v209 = vpop.f32.mrf.mxu0
    %v210 = vadd.f32 %v181, %v209
    %211 = vdwg.mxu0
    %212 = vst.msk [vmem:[#allocation14] sm:$0xff] %vm141, %v207
    %213 = vst.msk [vmem:[#allocation14 + $0x8] sm:$0xff] %vm141, %v210
    %v214 = vld [vmem:[#allocation7] sm:$0xff]
    %v215 = vld [vmem:[#allocation7 + $0x8] sm:$0xff]
    %v216 = vld [vmem:[#allocation11] sm:$0xff]
    %v217 = vld [vmem:[#allocation11 + $0x8] sm:$0xff]
    %v218 = vld [vmem:[#allocation11 + $0x10] sm:$0xff]
    %v219 = vld [vmem:[#allocation11 + $0x18] sm:$0xff]
    %v220 = vld [vmem:[%s8] sm:$0x1]
    %v222 = vperm.slane %v220, 0
    %v225 = vsel %vm141, %v214, 0
    %v228 = vsel %vm141, %v215, 0
    %230 = vmatpush.msra.mxu0 0.0
    %231 = vmatpush.msra.mxu0 0.0
    %232 = vmatpush.msra.mxu0 0.0
    %233 = vmatpush.msra.mxu0 0.0
    %234 = vmatpush.msra.mxu0 0.0
    %235 = vmatpush.msra.mxu0 0.0
    %236 = vmatpush.msra.mxu0 0.0
    %237 = vmatpush.msra.mxu0 0.0
    %238 = vmatpush.msra.mxu0 0.0
    %239 = vmatpush.msra.mxu0 0.0
    %240 = vmatpush.msra.mxu0 0.0
    %241 = vmatpush.msra.mxu0 0.0
    %242 = vmatpush.msra.mxu0 %v219
    %243 = vmatpush.msra.mxu0 %v218
    %244 = vmatpush.msra.mxu0 %v217
    %245 = vmatpush.msra.mxu0 %v216
    %246 = vmatmul.f32.gmra.mxu0 %v225
    %v247 = vpop.f32.mrf.mxu0
    %v248 = vadd.f32 %v222, %v247
    %249 = vmatmul.f32.gmra.mxu0 %v228
    %v250 = vpop.f32.mrf.mxu0
    %v251 = vadd.f32 %v222, %v250
    %252 = vdwg.mxu0
    %253 = vst.msk [vmem:[#allocation16] sm:$0xff] %vm141, %v248
    %254 = vst.msk [vmem:[#allocation16 + $0x8] sm:$0xff] %vm141, %v251
    // Predicated region
    $region62: #{tpu_custom_call.1} parent=1 // pred_check
      _
    $region63: #{tpu_custom_call.1} parent=1 // pred_check_branch
      %256 = sbr.rel (0) target = $region65
    $region64: #{tpu_custom_call.1} parent=1 // pred_region
      %258 = vsyncadd [#allocation4], 0
      %s259 = sshll.u32 [#allocation13], 4
      %s260 = int_to_ptr.vmem [resolvable:$true] %s259
      %s261 = sshll.u32 %s9, 4
      %s262 = int_to_ptr.hbm [resolvable:$true] %s261
      %267 = dma.vmem_to_hbm [thread:$0]  %s260, 256, %s262, [#allocation4], 128, 128, 8
    $region65: #{tpu_custom_call.1} parent=1 // pred_fallthru
      _
    // Predicated region
    $region66: #{tpu_custom_call.1} parent=1 // pred_check
      _
    $region67: #{tpu_custom_call.1} parent=1 // pred_check_branch
      %269 = sbr.rel (0) target = $region69
    $region68: #{tpu_custom_call.1} parent=1 // pred_region
      %271 = vsyncadd [#allocation15], 0
      %s272 = sshll.u32 [#allocation14], 4
      %s273 = int_to_ptr.vmem [resolvable:$true] %s272
      %s274 = sshll.u32 %s10, 4
      %s275 = int_to_ptr.hbm [resolvable:$true] %s274
      %280 = dma.vmem_to_hbm [thread:$0]  %s273, 256, %s275, [#allocation15], 128, 128, 8
    $region69: #{tpu_custom_call.1} parent=1 // pred_fallthru
      _
    // Predicated region
    $region70: #{tpu_custom_call.1} parent=1 // pred_check
      _
    $region71: #{tpu_custom_call.1} parent=1 // pred_check_branch
      %282 = sbr.rel (0) target = $region73
    $region72: #{tpu_custom_call.1} parent=1 // pred_region
      %284 = vsyncadd [#allocation15], 0
      %s285 = sshll.u32 [#allocation16], 4
      %s286 = int_to_ptr.vmem [resolvable:$true] %s285
      %s287 = sshll.u32 %s11, 4
      %s288 = int_to_ptr.hbm [resolvable:$true] %s287
      %293 = dma.vmem_to_hbm [thread:$0]  %s286, 256, %s288, [#allocation15], 128, 128, 8
    $region73: #{tpu_custom_call.1} parent=1 // pred_fallthru
      _
    // Predicated region
    $region74: #{tpu_custom_call.1} parent=1 // pred_check
      _
    $region75: #{tpu_custom_call.1} parent=1 // pred_check_branch
      %295 = sbr.rel (0) target = $region77
    $region76: #{tpu_custom_call.1} parent=1 // pred_region
      %297 = dma.done [#allocation4], 256
    $region77: #{tpu_custom_call.1} parent=1 // pred_fallthru
      _
    // Predicated region
    $region78: #{tpu_custom_call.1} parent=1 // pred_check
      _
    $region79: #{tpu_custom_call.1} parent=1 // pred_check_branch
      %299 = sbr.rel (0) target = $region81
    $region80: #{tpu_custom_call.1} parent=1 // pred_region
      %301 = dma.done [#allocation15], 256
    $region81: #{tpu_custom_call.1} parent=1 // pred_fallthru
      _
    // Predicated region
    $region82: #{tpu_custom_call.1} parent=1 // pred_check
      _
    $region83: #{tpu_custom_call.1} parent=1 // pred_check_branch
      %303 = sbr.rel (0) target = $region85
    $region84: #{tpu_custom_call.1} parent=1 // pred_region
      %305 = dma.done [#allocation15], 256
    $region85: #{tpu_custom_call.1} parent=1 // pred_fallthru
      _
    %306 = vsyncpa [#allocation3], 1
    %307 = vsyncpa [#allocation6], 1
    %308 = vsyncpa [#allocation9], 1
    %309 = vsyncpa [#allocation12], 1
    %310 = vsyncpa [#allocation4], 1
    %311 = vsyncpa [#allocation15], 1

// kernel: tpu_custom_call.1
$region0: #{tpu_custom_call.1}
  #allocation0 [shape = 'u32[]', space=smem, size = 0x4, offset = 0x4, fixed_abs, tag = 'smem constant byte address 0x4 - core index']
  #allocation1 [shape = 'u32[72,128]{1,0:T(1,128)}', space=vmem, size = 0x9000, scoped, tag = 'internal scratch']
  %s0 = inlined_call_operand.hbm [shape: f32[16,32], index: 0, kind: input, shape index: {}]
  %s1 = inlined_call_operand.hbm [shape: f32[16,32], index: 1, kind: input, shape index: {}]
  %s2 = inlined_call_operand.hbm [shape: f32[16,32], index: 2, kind: input, shape index: {}]
  %s3 = inlined_call_operand.hbm [shape: f32[32,32], index: 3, kind: input, shape index: {}]
  %s4 = inlined_call_operand.vmem [shape: f32[1,32], index: 4, kind: input, shape index: {}]
  %s5 = inlined_call_operand.hbm [shape: f32[32,32], index: 5, kind: input, shape index: {}]
  %s6 = inlined_call_operand.vmem [shape: f32[1,32], index: 6, kind: input, shape index: {}]
  %s7 = inlined_call_operand.hbm [shape: f32[32,32], index: 7, kind: input, shape index: {}]
  %s8 = inlined_call_operand.vmem [shape: f32[1,32], index: 8, kind: input, shape index: {}]
  %s9 = inlined_call_operand.hbm [shape: f32[16,32], index: 9, kind: output, shape index: {0}]
  %s10 = inlined_call_operand.hbm [shape: f32[16,32], index: 10, kind: output, shape index: {1}]
  %s11 = inlined_call_operand.hbm [shape: f32[16,32], index: 11, kind: output, shape index: {2}]
  %12 = xla_tuple %s9, %s10, %s11
  %s13 = sld [smem:[#allocation0]]
  $region86: #{tpu_custom_call.1} parent=0
    _
  %s15 = ssub.s32 1, %s13
  %s16 = scalar_select 0, %s15, %s13
  $region1: #{tpu_custom_call.1} parent=0
    #allocation2 [shape = 'u8[8192]{0}', space=vmem, size = 0x2000, scoped, tag = 'input window, operand 0, single buffered']
    #allocation3 [shape = 's32[1]{0}', space=sflag, size = 0x4, scoped, tag = 'scoped memory for tpu_custom_call.1']
    #allocation4 [shape = 's32[1]{0}', space=sflag, size = 0x4, scoped, tag = 'scoped memory for tpu_custom_call.1']
    #allocation5 [shape = 'u8[8192]{0}', space=vmem, size = 0x2000, scoped, tag = 'input window, operand 1, single buffered']
    #allocation6 [shape = 's32[1]{0}', space=sflag, size = 0x4, scoped, tag = 'scoped memory for tpu_custom_call.1']
    #allocation7 [shape = 'u8[8192]{0}', space=vmem, size = 0x2000, scoped, tag = 'input window, operand 2, single buffered']
    #allocation8 [shape = 'u8[16384]{0}', space=vmem, size = 0x4000, scoped, tag = 'input window, operand 3, single buffered']
    #allocation9 [shape = 's32[1]{0}', space=sflag, size = 0x4, scoped, tag = 'scoped memory for tpu_custom_call.1']
    #allocation10 [shape = 'u8[16384]{0}', space=vmem, size = 0x4000, scoped, tag = 'input window, operand 5, single buffered']
    #allocation11 [shape = 'u8[16384]{0}', space=vmem, size = 0x4000, scoped, tag = 'input window, operand 7, single buffered']
    #allocation12 [shape = 's32[1]{0}', space=sflag, size = 0x4, scoped, tag = 'scoped memory for tpu_custom_call.1']
    #allocation13 [shape = 'u8[8192]{0}', space=vmem, size = 0x2000, scoped, tag = 'output window, operand 0, single buffered']
    #allocation14 [shape = 'u8[8192]{0}', space=vmem, size = 0x2000, scoped, tag = 'output window, operand 1, single buffered']
    #allocation15 [shape = 's32[1]{0}', space=sflag, size = 0x4, scoped, tag = 'scoped memory for tpu_custom_call.1']
    #allocation16 [shape = 'u8[8192]{0}', space=vmem, size = 0x2000, scoped, tag = 'output window, operand 2, single buffered']
    %17 = vsyncpa [#allocation3], 0
    %18 = vsyncpa [#allocation6], 0
    %19 = vsyncpa [#allocation9], 0
    %20 = vsyncpa [#allocation12], 0
    %21 = vsyncpa [#allocation4], 0
    %22 = vsyncpa [#allocation15], 0
    // Predicated region
    $region2: #{tpu_custom_call.1} parent=1 // pred_check
      _
    $region3: #{tpu_custom_call.1} parent=1 // pred_check_branch
      %24 = sbr.rel (0) target = $region5
    $region4: #{tpu_custom_call.1} parent=1 // pred_region
      %26 = vsyncadd [#allocation3], 0
      %s27 = sshll.u32 %s0, 4
      %s28 = int_to_ptr.hbm [resolvable:$true] %s27
      %s29 = sshll.u32 [#allocation2], 4
      %s30 = int_to_ptr.vmem [resolvable:$true] %s29
      %35 = dma.hbm_to_vmem [thread:$0]  %s28, 256, %s30, [#allocation3], 128, 128, 8
    $region5: #{tpu_custom_call.1} parent=1 // pred_fallthru
      _
    // Predicated region
    $region6: #{tpu_custom_call.1} parent=1 // pred_check
      _
    $region7: #{tpu_custom_call.1} parent=1 // pred_check_branch
      %37 = sbr.rel (0) target = $region9
    $region8: #{tpu_custom_call.1} parent=1 // pred_region
      %39 = vsyncadd [#allocation6], 0
      %s40 = sshll.u32 %s1, 4
      %s41 = int_to_ptr.hbm [resolvable:$true] %s40
      %s42 = sshll.u32 [#allocation5], 4
      %s43 = int_to_ptr.vmem [resolvable:$true] %s42
      %48 = dma.hbm_to_vmem [thread:$0]  %s41, 256, %s43, [#allocation6], 128, 128, 8
    $region9: #{tpu_custom_call.1} parent=1 // pred_fallthru
      _
    // Predicated region
    $region10: #{tpu_custom_call.1} parent=1 // pred_check
      _
    $region11: #{tpu_custom_call.1} parent=1 // pred_check_branch
      %50 = sbr.rel (0) target = $region13
    $region12: #{tpu_custom_call.1} parent=1 // pred_region
      %52 = vsyncadd [#allocation6], 0
      %s53 = sshll.u32 %s2, 4
      %s54 = int_to_ptr.hbm [resolvable:$true] %s53
      %s55 = sshll.u32 [#allocation7], 4
      %s56 = int_to_ptr.vmem [resolvable:$true] %s55
      %61 = dma.hbm_to_vmem [thread:$0]  %s54, 256, %s56, [#allocation6], 128, 128, 8
    $region13: #{tpu_custom_call.1} parent=1 // pred_fallthru
      _
    // Predicated region
    $region14: #{tpu_custom_call.1} parent=1 // pred_check
      _
    $region15: #{tpu_custom_call.1} parent=1 // pred_check_branch
      %63 = sbr.rel (0) target = $region17
    $region16: #{tpu_custom_call.1} parent=1 // pred_region
      %65 = vsyncadd [#allocation9], 0
      %s66 = sshll.u32 %s3, 4
      %s67 = int_to_ptr.hbm [resolvable:$true] %s66
      %s68 = sshll.u32 [#allocation8], 4
      %s69 = int_to_ptr.vmem [resolvable:$true] %s68
      %74 = dma.hbm_to_vmem [thread:$0]  %s67, 512, %s69, [#allocation9], 128, 128, 8
    $region17: #{tpu_custom_call.1} parent=1 // pred_fallthru
      _
    // Predicated region
    $region18: #{tpu_custom_call.1} parent=1 // pred_check
      _
    $region19: #{tpu_custom_call.1} parent=1 // pred_check_branch
      %76 = sbr.rel (0) target = $region21
    $region20: #{tpu_custom_call.1} parent=1 // pred_region
      _
    $region21: #{tpu_custom_call.1} parent=1 // pred_fallthru
      _
    // Predicated region
    $region22: #{tpu_custom_call.1} parent=1 // pred_check
      _
    $region23: #{tpu_custom_call.1} parent=1 // pred_check_branch
      %78 = sbr.rel (0) target = $region25
    $region24: #{tpu_custom_call.1} parent=1 // pred_region
      %80 = vsyncadd [#allocation9], 0
      %s81 = sshll.u32 %s5, 4
      %s82 = int_to_ptr.hbm [resolvable:$true] %s81
      %s83 = sshll.u32 [#allocation10], 4
      %s84 = int_to_ptr.vmem [resolvable:$true] %s83
      %89 = dma.hbm_to_vmem [thread:$0]  %s82, 512, %s84, [#allocation9], 128, 128, 8
    $region25: #{tpu_custom_call.1} parent=1 // pred_fallthru
      _
    // Predicated region
    $region26: #{tpu_custom_call.1} parent=1 // pred_check
      _
    $region27: #{tpu_custom_call.1} parent=1 // pred_check_branch
      %91 = sbr.rel (0) target = $region29
    $region28: #{tpu_custom_call.1} parent=1 // pred_region
      _
    $region29: #{tpu_custom_call.1} parent=1 // pred_fallthru
      _
    // Predicated region
    $region30: #{tpu_custom_call.1} parent=1 // pred_check
      _
    $region31: #{tpu_custom_call.1} parent=1 // pred_check_branch
      %93 = sbr.rel (0) target = $region33
    $region32: #{tpu_custom_call.1} parent=1 // pred_region
      %95 = vsyncadd [#allocation12], 0
      %s96 = sshll.u32 %s7, 4
      %s97 = int_to_ptr.hbm [resolvable:$true] %s96
      %s98 = sshll.u32 [#allocation11], 4
      %s99 = int_to_ptr.vmem [resolvable:$true] %s98
      %104 = dma.hbm_to_vmem [thread:$0]  %s97, 512, %s99, [#allocation12], 128, 128, 8
    $region33: #{tpu_custom_call.1} parent=1 // pred_fallthru
      _
    // Predicated region
    $region34: #{tpu_custom_call.1} parent=1 // pred_check
      _
    $region35: #{tpu_custom_call.1} parent=1 // pred_check_branch
      %106 = sbr.rel (0) target = $region37
    $region36: #{tpu_custom_call.1} parent=1 // pred_region
      _
    $region37: #{tpu_custom_call.1} parent=1 // pred_fallthru
      _
    // Predicated region
    $region38: #{tpu_custom_call.1} parent=1 // pred_check
      _
    $region39: #{tpu_custom_call.1} parent=1 // pred_check_branch
      %108 = sbr.rel (0) target = $region41
    $region40: #{tpu_custom_call.1} parent=1 // pred_region
      %110 = dma.done [#allocation3], 256
    $region41: #{tpu_custom_call.1} parent=1 // pred_fallthru
      _
    // Predicated region
    $region42: #{tpu_custom_call.1} parent=1 // pred_check
      _
    $region43: #{tpu_custom_call.1} parent=1 // pred_check_branch
      %112 = sbr.rel (0) target = $region45
    $region44: #{tpu_custom_call.1} parent=1 // pred_region
      %114 = dma.done [#allocation6], 256
    $region45: #{tpu_custom_call.1} parent=1 // pred_fallthru
      _
    // Predicated region
    $region46: #{tpu_custom_call.1} parent=1 // pred_check
      _
    $region47: #{tpu_custom_call.1} parent=1 // pred_check_branch
      %116 = sbr.rel (0) target = $region49
    $region48: #{tpu_custom_call.1} parent=1 // pred_region
      %118 = dma.done [#allocation6], 256
    $region49: #{tpu_custom_call.1} parent=1 // pred_fallthru
      _
    // Predicated region
    $region50: #{tpu_custom_call.1} parent=1 // pred_check
      _
    $region51: #{tpu_custom_call.1} parent=1 // pred_check_branch
      %120 = sbr.rel (0) target = $region53
    $region52: #{tpu_custom_call.1} parent=1 // pred_region
      %122 = dma.done [#allocation9], 512
    $region53: #{tpu_custom_call.1} parent=1 // pred_fallthru
      _
    // Predicated region
    $region54: #{tpu_custom_call.1} parent=1 // pred_check
      _
    $region55: #{tpu_custom_call.1} parent=1 // pred_check_branch
      %124 = sbr.rel (0) target = $region57
    $region56: #{tpu_custom_call.1} parent=1 // pred_region
      %126 = dma.done [#allocation9], 512
    $region57: #{tpu_custom_call.1} parent=1 // pred_fallthru
      _
    // Predicated region
    $region58: #{tpu_custom_call.1} parent=1 // pred_check
      _
    $region59: #{tpu_custom_call.1} parent=1 // pred_check_branch
      %128 = sbr.rel (0) target = $region61
    $region60: #{tpu_custom_call.1} parent=1 // pred_region
      %130 = dma.done [#allocation12], 512
    $region61: #{tpu_custom_call.1} parent=1 // pred_fallthru
      _
    %v131 = vld [vmem:[#allocation2] sm:$0xff]
    %v132 = vld [vmem:[#allocation2 + $0x8] sm:$0xff]
    %v133 = vld [vmem:[#allocation8] sm:$0xff]
    %v134 = vld [vmem:[#allocation8 + $0x8] sm:$0xff]
    %v135 = vld [vmem:[#allocation8 + $0x10] sm:$0xff]
    %v136 = vld [vmem:[#allocation8 + $0x18] sm:$0xff]
    %v137 = vld [vmem:[%s4] sm:$0x1]
    %v139 = vperm.slane %v137, 0
    %vm141 = vcmask 261120
    %v143 = vsel %vm141, %v131, 0
    %v146 = vsel %vm141, %v132, 0
    %148 = vmatpush.msra.mxu0 0.0
    %149 = vmatpush.msra.mxu0 0.0
    %150 = vmatpush.msra.mxu0 0.0
    %151 = vmatpush.msra.mxu0 0.0
    %152 = vmatpush.msra.mxu0 0.0
    %153 = vmatpush.msra.mxu0 0.0
    %154 = vmatpush.msra.mxu0 0.0
    %155 = vmatpush.msra.mxu0 0.0
    %156 = vmatpush.msra.mxu0 0.0
    %157 = vmatpush.msra.mxu0 0.0
    %158 = vmatpush.msra.mxu0 0.0
    %159 = vmatpush.msra.mxu0 0.0
    %160 = vmatpush.msra.mxu0 %v136
    %161 = vmatpush.msra.mxu0 %v135
    %162 = vmatpush.msra.mxu0 %v134
    %163 = vmatpush.msra.mxu0 %v133
    %164 = vmatmul.f32.gmra.mxu0 %v143
    %v165 = vpop.f32.mrf.mxu0
    %v166 = vadd.f32 %v139, %v165
    %167 = vmatmul.f32.gmra.mxu0 %v146
    %v168 = vpop.f32.mrf.mxu0
    %v169 = vadd.f32 %v139, %v168
    %170 = vdwg.mxu0
    %171 = vst.msk [vmem:[#allocation13] sm:$0xff] %vm141, %v166
    %172 = vst.msk [vmem:[#allocation13 + $0x8] sm:$0xff] %vm141, %v169
    %v173 = vld [vmem:[#allocation5] sm:$0xff]
    %v174 = vld [vmem:[#allocation5 + $0x8] sm:$0xff]
    %v175 = vld [vmem:[#allocation10] sm:$0xff]
    %v176 = vld [vmem:[#allocation10 + $0x8] sm:$0xff]
    %v177 = vld [vmem:[#allocation10 + $0x10] sm:$0xff]
    %v178 = vld [vmem:[#allocation10 + $0x18] sm:$0xff]
    %v179 = vld [vmem:[%s6] sm:$0x1]
    %v181 = vperm.slane %v179, 0
    %v184 = vsel %vm141, %v173, 0
    %v187 = vsel %vm141, %v174, 0
    %189 = vmatpush.msra.mxu0 0.0
    %190 = vmatpush.msra.mxu0 0.0
    %191 = vmatpush.msra.mxu0 0.0
    %192 = vmatpush.msra.mxu0 0.0
    %193 = vmatpush.msra.mxu0 0.0
    %194 = vmatpush.msra.mxu0 0.0
    %195 = vmatpush.msra.mxu0 0.0
    %196 = vmatpush.msra.mxu0 0.0
    %197 = vmatpush.msra.mxu0 0.0
    %198 = vmatpush.msra.mxu0 0.0
    %199 = vmatpush.msra.mxu0 0.0
    %200 = vmatpush.msra.mxu0 0.0
    %201 = vmatpush.msra.mxu0 %v178
    %202 = vmatpush.msra.mxu0 %v177
    %203 = vmatpush.msra.mxu0 %v176
    %204 = vmatpush.msra.mxu0 %v175
    %205 = vmatmul.f32.gmra.mxu0 %v184
    %v206 = vpop.f32.mrf.mxu0
    %v207 = vadd.f32 %v181, %v206
    %208 = vmatmul.f32.gmra.mxu0 %v187
    %v209 = vpop.f32.mrf.mxu0
    %v210 = vadd.f32 %v181, %v209
    %211 = vdwg.mxu0
    %212 = vst.msk [vmem:[#allocation14] sm:$0xff] %vm141, %v207
    %213 = vst.msk [vmem:[#allocation14 + $0x8] sm:$0xff] %vm141, %v210
    %v214 = vld [vmem:[#allocation7] sm:$0xff]
    %v215 = vld [vmem:[#allocation7 + $0x8] sm:$0xff]
    %v216 = vld [vmem:[#allocation11] sm:$0xff]
    %v217 = vld [vmem:[#allocation11 + $0x8] sm:$0xff]
    %v218 = vld [vmem:[#allocation11 + $0x10] sm:$0xff]
    %v219 = vld [vmem:[#allocation11 + $0x18] sm:$0xff]
    %v220 = vld [vmem:[%s8] sm:$0x1]
    %v222 = vperm.slane %v220, 0
    %v225 = vsel %vm141, %v214, 0
    %v228 = vsel %vm141, %v215, 0
    %230 = vmatpush.msra.mxu0 0.0
    %231 = vmatpush.msra.mxu0 0.0
    %232 = vmatpush.msra.mxu0 0.0
    %233 = vmatpush.msra.mxu0 0.0
    %234 = vmatpush.msra.mxu0 0.0
    %235 = vmatpush.msra.mxu0 0.0
    %236 = vmatpush.msra.mxu0 0.0
    %237 = vmatpush.msra.mxu0 0.0
    %238 = vmatpush.msra.mxu0 0.0
    %239 = vmatpush.msra.mxu0 0.0
    %240 = vmatpush.msra.mxu0 0.0
    %241 = vmatpush.msra.mxu0 0.0
    %242 = vmatpush.msra.mxu0 %v219
    %243 = vmatpush.msra.mxu0 %v218
    %244 = vmatpush.msra.mxu0 %v217
    %245 = vmatpush.msra.mxu0 %v216
    %246 = vmatmul.f32.gmra.mxu0 %v225
    %v247 = vpop.f32.mrf.mxu0
    %v248 = vadd.f32 %v222, %v247
    %249 = vmatmul.f32.gmra.mxu0 %v228
    %v250 = vpop.f32.mrf.mxu0
    %v251 = vadd.f32 %v222, %v250
    %252 = vdwg.mxu0
    %253 = vst.msk [vmem:[#allocation16] sm:$0xff] %vm141, %v248
    %254 = vst.msk [vmem:[#allocation16 + $0x8] sm:$0xff] %vm141, %v251
    // Predicated region
    $region62: #{tpu_custom_call.1} parent=1 // pred_check
      _
    $region63: #{tpu_custom_call.1} parent=1 // pred_check_branch
      %256 = sbr.rel (0) target = $region65
    $region64: #{tpu_custom_call.1} parent=1 // pred_region
      %258 = vsyncadd [#allocation4], 0
      %s259 = sshll.u32 [#allocation13], 4
      %s260 = int_to_ptr.vmem [resolvable:$true] %s259
      %s261 = sshll.u32 %s9, 4
      %s262 = int_to_ptr.hbm [resolvable:$true] %s261
      %267 = dma.vmem_to_hbm [thread:$0]  %s260, 256, %s262, [#allocation4], 128, 128, 8
    $region65: #{tpu_custom_call.1} parent=1 // pred_fallthru
      _
    // Predicated region
    $region66: #{tpu_custom_call.1} parent=1 // pred_check
      _
    $region67: #{tpu_custom_call.1} parent=1 // pred_check_branch
      %269 = sbr.rel (0) target = $region69
    $region68: #{tpu_custom_call.1} parent=1 // pred_region
      %271 = vsyncadd [#allocation15], 0
      %s272 = sshll.u32 [#allocation14], 4
      %s273 = int_to_ptr.vmem [resolvable:$true] %s272
      %s274 = sshll.u32 %s10, 4
      %s275 = int_to_ptr.hbm [resolvable:$true] %s274
      %280 = dma.vmem_to_hbm [thread:$0]  %s273, 256, %s275, [#allocation15], 128, 128, 8
    $region69: #{tpu_custom_call.1} parent=1 // pred_fallthru
      _
    // Predicated region
    $region70: #{tpu_custom_call.1} parent=1 // pred_check
      _
    $region71: #{tpu_custom_call.1} parent=1 // pred_check_branch
      %282 = sbr.rel (0) target = $region73
    $region72: #{tpu_custom_call.1} parent=1 // pred_region
      %284 = vsyncadd [#allocation15], 0
      %s285 = sshll.u32 [#allocation16], 4
      %s286 = int_to_ptr.vmem [resolvable:$true] %s285
      %s287 = sshll.u32 %s11, 4
      %s288 = int_to_ptr.hbm [resolvable:$true] %s287
      %293 = dma.vmem_to_hbm [thread:$0]  %s286, 256, %s288, [#allocation15], 128, 128, 8
    $region73: #{tpu_custom_call.1} parent=1 // pred_fallthru
      _
    // Predicated region
    $region74: #{tpu_custom_call.1} parent=1 // pred_check
      _
    $region75: #{tpu_custom_call.1} parent=1 // pred_check_branch
      %295 = sbr.rel (0) target = $region77
    $region76: #{tpu_custom_call.1} parent=1 // pred_region
      %297 = dma.done [#allocation4], 256
    $region77: #{tpu_custom_call.1} parent=1 // pred_fallthru
      _
    // Predicated region
    $region78: #{tpu_custom_call.1} parent=1 // pred_check
      _
    $region79: #{tpu_custom_call.1} parent=1 // pred_check_branch
      %299 = sbr.rel (0) target = $region81
    $region80: #{tpu_custom_call.1} parent=1 // pred_region
      %301 = dma.done [#allocation15], 256
    $region81: #{tpu_custom_call.1} parent=1 // pred_fallthru
      _
    // Predicated region
    $region82: #{tpu_custom_call.1} parent=1 // pred_check
      _
    $region83: #{tpu_custom_call.1} parent=1 // pred_check_branch
      %303 = sbr.rel (0) target = $region85
    $region84: #{tpu_custom_call.1} parent=1 // pred_region
      %305 = dma.done [#allocation15], 256
    $region85: #{tpu_custom_call.1} parent=1 // pred_fallthru
      _
    %306 = vsyncpa [#allocation3], 1
    %307 = vsyncpa [#allocation6], 1
    %308 = vsyncpa [#allocation9], 1
    %309 = vsyncpa [#allocation12], 1
    %310 = vsyncpa [#allocation4], 1
    %311 = vsyncpa [#allocation15], 1

</llo_original>
